<compile_context>
chip_gen: v7x
topology: tpu7x:2x2x1
jax: 0.10.0
libtpu: 0.0.40
codegen_flags: <defaults>
</compile_context>

<pallas_src>
import math
import functools

import jax
import jax.numpy as jnp
from jax.experimental import pallas as pl
from jax.experimental.pallas import tpu as pltpu

GELU_C = math.sqrt(2.0 / math.pi)


def _round_up(a, b):
    return (a + b - 1) // b * b


# ----------------------------- kernel body -----------------------------

def _ffn_kernel(x_ref, g_ref, beta_ref, w1_ref, b1_ref, w2_ref, b2_ref,
                o_ref, xn_ref, acc_ref):
    """Grid = (token_tiles, d_ff_chunks). Axis 1 is the reduction ('arbitrary') axis."""
    j = pl.program_id(1)

    # --- first d_ff chunk of this token tile: LayerNorm once, seed accumulator with b2 ---
    @pl.when(j == 0)
    def _():
        x = x_ref[...].astype(jnp.float32)
        mu = jnp.mean(x, axis=-1, keepdims=True)
        xc = x - mu
        var = jnp.mean(xc * xc, axis=-1, keepdims=True)      # biased variance (torch LN)
        xn = xc * jax.lax.rsqrt(var + 1e-6)                   # eps = 1e-6 as in the module
        xn = xn * g_ref[...] + beta_ref[...]
        xn_ref[...] = xn.astype(xn_ref.dtype)                 # bf16 MXU operand, cached
        # Seed with the w_2 bias (saves a (tm, d_model) add in the epilogue).
        acc_ref[...] = jnp.broadcast_to(b2_ref[...], acc_ref.shape).astype(jnp.float32)

    # --- w_1 chunk: (tm, d_model) @ (d_model, tff) on the MXU, f32 accumulate ---
    h = jnp.dot(xn_ref[...], w1_ref[...],
                preferred_element_type=jnp.float32) + b1_ref[...]

    # --- GELU (tanh approximation, exactly the reference module's formula) ---
    # factored cubic: c*(h + 0.044715*h^3) == c*h*(1 + 0.044715*h*h)  (one fewer vmul)
    h = 0.5 * h * (1.0 + jnp.tanh(GELU_C * h * (1.0 + 0.044715 * (h * h))))

    # dropout_1: identity in eval mode
    # --- w_2 chunk: (tm, tff) @ (tff, d_model), accumulate into f32 scratch ---
    acc_ref[...] += jnp.dot(h.astype(w2_ref.dtype), w2_ref[...],
                            preferred_element_type=jnp.float32)
    # dropout_2: identity in eval mode

    # --- last chunk: residual with the ORIGINAL (pre-norm) x, store ---
    @pl.when(j == pl.num_programs(1) - 1)
    def _():
        o_ref[...] = (acc_ref[...] + x_ref[...].astype(jnp.float32)).astype(o_ref.dtype)


# ----------------------- generation-aware config ------------------------

@functools.lru_cache(maxsize=None)
def _vmem_capacity_bytes():
    """Physical VMEM of the local TPU; conservative (v7x, 64 MiB) if unknown."""
    try:
        info = pltpu.get_tpu_info()
        for name in ("vmem_capacity_bytes", "vmem_size_bytes", "vmem_bytes"):
            v = getattr(info, name, None)
            if v:
                return int(v)
    except Exception:
        pass
    return 64 * 1024 * 1024


def _derive_tiles(M, d_model, d_ff, tm_req, tff_req):
    tm_eff = min(tm_req, _round_up(M, 8))
    tm_eff = max(8, _round_up(tm_eff, 8))
    # Keep >= 2 token tiles whenever possible so v7x's second TensorCore gets work
    # on the "parallel" token axis (v5e/v6e have one TC, so this is harmless there).
    if M > 8 and (M + tm_eff - 1) // tm_eff < 2:
        tm_eff = _round_up((M + 1) // 2, 8)
    M_pad = _round_up(M, tm_eff)

    if d_ff <= tff_req:
        tff_eff, d_ff_pad = d_ff, d_ff
    else:
        tff_eff = _round_up(tff_req, 128)
        d_ff_pad = _round_up(d_ff, tff_eff)
    return tm_eff, M_pad, tff_eff, d_ff_pad


def _estimate_vmem_bytes(tm_eff, tff_eff, d_model, io_itemsize, nbuf_w):
    return (
        2 * tm_eff * d_model * io_itemsize           # x tile, double-buffered
        + 2 * tm_eff * d_model * io_itemsize         # out tile, double-buffered
        + nbuf_w * 2 * d_model * tff_eff * 2         # w1 + w2 chunks (bf16), nbuf_w-buffered
        + 2 * (tff_eff + 3 * d_model) * 4            # b1 / b2 / gamma / beta (f32)
        + tm_eff * d_model * (2 + 4)                 # xn (bf16) + acc (f32) scratch
    )


def _weight_spec(block_shape, index_map, nbuf):
    """Weight-chunk BlockSpec; deeper buffering where VMEM allows (perf review)."""
    if nbuf != 2:
        try:
            return pl.BlockSpec(block_shape, index_map, pipeline_mode=pl.Buffered(nbuf))
        except TypeError:
            pass  # older BlockSpec signature -> fall back to default double-buffering
    return pl.BlockSpec(block_shape, index_map)


# ------------------------------- pallas_call ------------------------------

@functools.partial(
    jax.jit,
    static_argnames=("tm_eff", "tff_eff", "M_pad", "d_ff_pad", "nbuf_w", "vmem_limit"))
def _ffn_impl(x, gamma, beta, w1, b1, w2, b2, *,
              tm_eff, tff_eff, M_pad, d_ff_pad, nbuf_w, vmem_limit):
    B, S, d_model = x.shape
    d_ff = w1.shape[1]
    M = B * S

    x2d = x.reshape(M, d_model)
    if M_pad != M:
        # Zero-padded rows are harmless (LN of zeros is finite thanks to eps>0)
        # and are sliced off afterwards.
        x2d = jnp.pad(x2d, ((0, M_pad - M), (0, 0)))

    if d_ff_pad != d_ff:
        # Padded d_ff columns contribute exactly 0: gelu(0)=0 and the matching w2 rows are 0.
        w1 = jnp.pad(w1, ((0, 0), (0, d_ff_pad - d_ff)))
        b1 = jnp.pad(b1, (0, d_ff_pad - d_ff))
        w2 = jnp.pad(w2, ((0, d_ff_pad - d_ff), (0, 0)))

    # bf16 MXU operands (LayerNorm / GELU / bias / residual stay in f32).
    w1b = w1.astype(jnp.bfloat16)
    w2b = w2.astype(jnp.bfloat16)

    g2d = gamma.reshape(1, d_model).astype(jnp.float32)
    be2d = beta.reshape(1, d_model).astype(jnp.float32)
    b1_2d = b1.reshape(1, d_ff_pad).astype(jnp.float32)
    b2_2d = b2.reshape(1, d_model).astype(jnp.float32)

    grid = (M_pad // tm_eff, d_ff_pad // tff_eff)

    out2d = pl.pallas_call(
        _ffn_kernel,
        out_shape=jax.ShapeDtypeStruct((M_pad, d_model), x.dtype),
        grid_spec=pltpu.PrefetchScalarGridSpec(
            num_scalar_prefetch=0,
            grid=grid,
            in_specs=[
                pl.BlockSpec((tm_eff, d_model), lambda i, j: (i, 0)),     # x tile
                pl.BlockSpec((1, d_model), lambda i, j: (0, 0)),          # ln gamma
                pl.BlockSpec((1, d_model), lambda i, j: (0, 0)),          # ln beta
                _weight_spec((d_model, tff_eff), lambda i, j: (0, j), nbuf_w),  # w1 chunk
                pl.BlockSpec((1, tff_eff), lambda i, j: (0, j)),          # b1 chunk
                _weight_spec((tff_eff, d_model), lambda i, j: (j, 0), nbuf_w),  # w2 chunk
                pl.BlockSpec((1, d_model), lambda i, j: (0, 0)),          # b2
            ],
            out_specs=pl.BlockSpec((tm_eff, d_model), lambda i, j: (i, 0)),
            scratch_shapes=[
                pltpu.VMEM((tm_eff, d_model), jnp.bfloat16),   # cached LayerNorm output
                pltpu.VMEM((tm_eff, d_model), jnp.float32),    # f32 output accumulator
            ],
        ),
        compiler_params=pltpu.CompilerParams(
            dimension_semantics=("parallel", "arbitrary"),
            vmem_limit_bytes=vmem_limit,
        ),
    )(x2d, g2d, be2d, w1b, b1_2d, w2b, b2_2d)

    if M_pad != M:
        out2d = out2d[:M]
    return out2d.reshape(B, S, d_model)


def positionwise_ffn(x, gamma, beta, w1, b1, w2, b2, *, tm=None, tff=None):
    """x: (B, S, d_model). Weights in 'right-multiply' layout:
       w1: (d_model, d_ff), w2: (d_ff, d_model), biases 1-D."""
    B, S, d_model = x.shape
    d_ff = w1.shape[1]
    M = B * S

    cap = _vmem_capacity_bytes()
    big_vmem = cap >= 100 * 1024 * 1024         # v5e / v6e (128 MiB)  vs  v7x (64 MiB/TC)
    if tm is None:
        # v6e ridge ~680 FLOP/byte -> needs tm~512+; v7x ridge ~311 -> tm~320-384 suffices.
        tm = 512 if big_vmem else 352
    if tff is None:
        # Larger d_ff chunks cut per-step overhead where VMEM allows (v5e/v6e).
        tff = 1024 if big_vmem else 512
    nbuf_w = 3 if big_vmem else 2               # deeper weight-stream buffering if it fits
    vmem_budget = (3 * cap) // 4                # what our buffers may occupy
    vmem_limit_cap = (84 * cap) // 100          # scoped limit handed to Mosaic (headroom)

    io_itemsize = jnp.dtype(x.dtype).itemsize
    tm_req, tff_req = int(tm), int(tff)
    while True:
        tm_eff, M_pad, tff_eff, d_ff_pad = _derive_tiles(M, d_model, d_ff, tm_req, tff_req)
        est = _estimate_vmem_bytes(tm_eff, tff_eff, d_model, io_itemsize, nbuf_w)
        if est <= vmem_budget or (tm_req <= 64 and tff_req <= 256):
            break
        if tff_req > 256:
            tff_req //= 2
        else:
            tm_req = max(64, tm_req // 2)

    vmem_limit = int(min(max(est + est // 2, 32 * 1024 * 1024), vmem_limit_cap))
    vmem_limit = max(vmem_limit, 32 * 1024 * 1024)
    if vmem_limit < est:                        # pathological huge-d_model fallback
        vmem_limit = int(min(est + (4 << 20), cap))

    return _ffn_impl(x, gamma, beta, w1, b1, w2, b2,
                     tm_eff=tm_eff, tff_eff=tff_eff, M_pad=M_pad, d_ff_pad=d_ff_pad,
                     nbuf_w=nbuf_w, vmem_limit=vmem_limit)


# ------------------------- references for verification -------------------------

def _reference_f32(x, gamma, beta, w1, b1, w2, b2):
    """Pure f32 PyTorch-module semantics."""
    xf = x.astype(jnp.float32)
    mu = jnp.mean(xf, axis=-1, keepdims=True)
    var = jnp.mean((xf - mu) ** 2, axis=-1, keepdims=True)
    xn = (xf - mu) / jnp.sqrt(var + 1e-6) * gamma + beta
    h = xn @ w1 + b1
    h = 0.5 * h * (1.0 + jnp.tanh(GELU_C * (h + 0.044715 * h ** 3)))
    y = h @ w2 + b2
    return (y + xf).astype(x.dtype)


def _reference_bf16_matmul(x, gamma, beta, w1, b1, w2, b2):
    """Same math but with bf16 MXU operands, mimicking the kernel's arithmetic."""
    xf = x.astype(jnp.float32)
    mu = jnp.mean(xf, axis=-1, keepdims=True)
    var = jnp.mean((xf - mu) ** 2, axis=-1, keepdims=True)
    xn = ((xf - mu) * jax.lax.rsqrt(var + 1e-6) * gamma + beta).astype(jnp.bfloat16)
    h = jnp.dot(xn, w1.astype(jnp.bfloat16), preferred_element_type=jnp.float32) + b1
    h = 0.5 * h * (1.0 + jnp.tanh(GELU_C * (h + 0.044715 * h ** 3)))
    y = jnp.dot(h.astype(jnp.bfloat16), w2.astype(jnp.bfloat16),
                preferred_element_type=jnp.float32) + b2
    return (y + xf).astype(x.dtype)


def _run_case(seed, B, S, d_model, d_ff, **overrides):
    key = jax.random.fold_in(jax.random.PRNGKey(0), seed)
    kx, kw1, kb1, kw2, kb2, kg, kbe = jax.random.split(key, 7)

    x = jax.random.normal(kx, (B, S, d_model), dtype=jnp.float32)

    lim1 = 1.0 / math.sqrt(d_model)
    lim2 = 1.0 / math.sqrt(d_ff)
    w1 = jax.random.uniform(kw1, (d_model, d_ff), jnp.float32, -lim1, lim1)
    b1 = jax.random.uniform(kb1, (d_ff,), jnp.float32, -lim1, lim1)
    w2 = jax.random.uniform(kw2, (d_ff, d_model), jnp.float32, -lim2, lim2)
    b2 = jax.random.uniform(kb2, (d_model,), jnp.float32, -lim2, lim2)
    gamma = 1.0 + 0.05 * jax.random.normal(kg, (d_model,), jnp.float32)
    beta = 0.05 * jax.random.normal(kbe, (d_model,), jnp.float32)

    out = positionwise_ffn(x, gamma, beta, w1, b1, w2, b2, **overrides)
    out = jax.block_until_ready(out)

    assert out.shape == x.shape and out.dtype == x.dtype

    # Tight check vs a reference with the same bf16 MXU-operand arithmetic.
    ref_bf16 = _reference_bf16_matmul(x, gamma, beta, w1, b1, w2, b2)
    assert jnp.allclose(out, ref_bf16, atol=5e-3, rtol=5e-3), "mismatch vs bf16-matmul reference"

    # Loose sanity check vs the pure-f32 module semantics (bf16 rounding only).
    ref_f32 = _reference_f32(x, gamma, beta, w1, b1, w2, b2)
    assert jnp.allclose(out, ref_f32, atol=1e-1, rtol=1e-1), "mismatch vs f32 reference"


if __name__ == "__main__":
    # Case 1: module-consistent small shapes (single d_ff chunk, 2 token tiles).
    _run_case(0, B=2, S=8, d_model=32, d_ff=64)
    # Case 2: exercise the d_ff reduction loop (tff=128 -> 2 chunks) and accumulator path.
    _run_case(1, B=2, S=8, d_model=32, d_ff=256, tff=128)
    print("KERNEL_OK")
</pallas_src>

<mosaic_0001>
module attributes {stable_mosaic.version = 11 : i64} {
  func.func @_ffn_kernel(%arg0: i32, %arg1: i32, %arg2: memref<8x32xf32, #tpu.memory_space<vmem>>, %arg3: memref<1x32xf32, #tpu.memory_space<vmem>>, %arg4: memref<1x32xf32, #tpu.memory_space<vmem>>, %arg5: memref<32x64xbf16, #tpu.memory_space<vmem>>, %arg6: memref<1x64xf32, #tpu.memory_space<vmem>>, %arg7: memref<64x32xbf16, #tpu.memory_space<vmem>>, %arg8: memref<1x32xf32, #tpu.memory_space<vmem>>, %arg9: memref<8x32xf32, #tpu.memory_space<vmem>>, %arg10: memref<8x32xbf16, #tpu.memory_space<vmem>>, %arg11: memref<8x32xf32, #tpu.memory_space<vmem>>) attributes {dimension_semantics = [#tpu.dimension_semantics<parallel>, #tpu.dimension_semantics<arbitrary>], iteration_bounds = array<i64: 2, 1>, scalar_prefetch = 0 : i64, scratch_operands = 2 : i64, tpu.core_type = #tpu.core_type<tc>, window_params = [{transform_indices = @transform_0, window_bounds = array<i64: 8, 32>}, {pipeline_mode = #tpu.pipeline_mode<synchronous>, transform_indices = @transform_1, window_bounds = array<i64: 1, 32>}, {pipeline_mode = #tpu.pipeline_mode<synchronous>, transform_indices = @transform_2, window_bounds = array<i64: 1, 32>}, {transform_indices = @transform_3, window_bounds = array<i64: 32, 64>}, {transform_indices = @transform_4, window_bounds = array<i64: 1, 64>}, {transform_indices = @transform_5, window_bounds = array<i64: 64, 32>}, {pipeline_mode = #tpu.pipeline_mode<synchronous>, transform_indices = @transform_6, window_bounds = array<i64: 1, 32>}, {transform_indices = @transform_7, window_bounds = array<i64: 8, 32>}]} {
    %c0_i32 = arith.constant 0 : i32
    %0 = arith.cmpi eq, %arg1, %c0_i32 : i32
    %1 = arith.extui %0 : i1 to i32
    %c0_i32_0 = arith.constant 0 : i32
    %2 = arith.cmpi ne, %1, %c0_i32_0 : i32
    scf.if %2 {
      %c0_20 = arith.constant 0 : index
      %c0_21 = arith.constant 0 : index
      %32 = vector.load %arg2[%c0_20, %c0_21] : memref<8x32xf32, #tpu.memory_space<vmem>>, vector<8x32xf32>
      %cst_22 = arith.constant dense<0.000000e+00> : vector<8xf32>
      %33 = vector.multi_reduction <add>, %32, %cst_22 [1] : vector<8x32xf32> to vector<8xf32>
      %34 = vector.shape_cast %33 : vector<8xf32> to vector<8x1xf32>
      %cst_23 = arith.constant 3.200000e+01 : f32
      %35 = vector.broadcast %cst_23 : f32 to vector<8x1xf32>
      %36 = arith.divf %34, %35 : vector<8x1xf32>
      %37 = vector.broadcast %36 : vector<8x1xf32> to vector<8x32xf32>
      %38 = arith.subf %32, %37 : vector<8x32xf32>
      %39 = arith.mulf %38, %38 : vector<8x32xf32>
      %cst_24 = arith.constant dense<0.000000e+00> : vector<8xf32>
      %40 = vector.multi_reduction <add>, %39, %cst_24 [1] : vector<8x32xf32> to vector<8xf32>
      %41 = vector.shape_cast %40 : vector<8xf32> to vector<8x1xf32>
      %cst_25 = arith.constant 3.200000e+01 : f32
      %42 = vector.broadcast %cst_25 : f32 to vector<8x1xf32>
      %43 = arith.divf %41, %42 : vector<8x1xf32>
      %cst_26 = arith.constant 9.99999997E-7 : f32
      %44 = vector.broadcast %cst_26 : f32 to vector<8x1xf32>
      %45 = arith.addf %43, %44 : vector<8x1xf32>
      %46 = math.rsqrt %45 : vector<8x1xf32>
      %47 = vector.broadcast %46 : vector<8x1xf32> to vector<8x32xf32>
      %48 = arith.mulf %38, %47 : vector<8x32xf32>
      %c0_27 = arith.constant 0 : index
      %c0_28 = arith.constant 0 : index
      %49 = vector.load %arg3[%c0_27, %c0_28] : memref<1x32xf32, #tpu.memory_space<vmem>>, vector<1x32xf32>
      %50 = vector.broadcast %49 : vector<1x32xf32> to vector<8x32xf32>
      %51 = arith.mulf %48, %50 : vector<8x32xf32>
      %c0_29 = arith.constant 0 : index
      %c0_30 = arith.constant 0 : index
      %52 = vector.load %arg4[%c0_29, %c0_30] : memref<1x32xf32, #tpu.memory_space<vmem>>, vector<1x32xf32>
      %53 = vector.broadcast %52 : vector<1x32xf32> to vector<8x32xf32>
      %54 = arith.addf %51, %53 : vector<8x32xf32>
      %55 = arith.truncf %54 : vector<8x32xf32> to vector<8x32xbf16>
      %c0_31 = arith.constant 0 : index
      %c0_32 = arith.constant 0 : index
      %56 = vector.load %arg10[%c0_31, %c0_32] : memref<8x32xbf16, #tpu.memory_space<vmem>>, vector<8x32xbf16>
      tpu.vector_store %arg10[%c0_31, %c0_32], %55 {strides = array<i32>} : memref<8x32xbf16, #tpu.memory_space<vmem>>, vector<8x32xbf16>,
      %c0_33 = arith.constant 0 : index
      %c0_34 = arith.constant 0 : index
      %57 = vector.load %arg8[%c0_33, %c0_34] : memref<1x32xf32, #tpu.memory_space<vmem>>, vector<1x32xf32>
      %58 = vector.shape_cast %57 : vector<1x32xf32> to vector<1x32xf32>
      %59 = vector.broadcast %58 : vector<1x32xf32> to vector<8x32xf32>
      %c0_35 = arith.constant 0 : index
      %c0_36 = arith.constant 0 : index
      %60 = vector.load %arg11[%c0_35, %c0_36] : memref<8x32xf32, #tpu.memory_space<vmem>>, vector<8x32xf32>
      tpu.vector_store %arg11[%c0_35, %c0_36], %59 {strides = array<i32>} : memref<8x32xf32, #tpu.memory_space<vmem>>, vector<8x32xf32>,
    } else {
    }
    %c0 = arith.constant 0 : index
    %c0_1 = arith.constant 0 : index
    %3 = vector.load %arg10[%c0, %c0_1] : memref<8x32xbf16, #tpu.memory_space<vmem>>, vector<8x32xbf16>
    %c0_2 = arith.constant 0 : index
    %c0_3 = arith.constant 0 : index
    %4 = vector.load %arg5[%c0_2, %c0_3] : memref<32x64xbf16, #tpu.memory_space<vmem>>, vector<32x64xbf16>
    %cst = arith.constant dense<0.000000e+00> : vector<8x64xf32>
    %5 = tpu.matmul %3, %4, %cst {dimension_numbers = #tpu.dot_dimension_numbers<[1], [0], [0], [1], [0, 0, 1, 1], [], []>} : vector<8x32xbf16>, vector<32x64xbf16>, vector<8x64xf32> -> vector<8x64xf32>
    %c0_4 = arith.constant 0 : index
    %c0_5 = arith.constant 0 : index
    %6 = vector.load %arg6[%c0_4, %c0_5] : memref<1x64xf32, #tpu.memory_space<vmem>>, vector<1x64xf32>
    %7 = vector.broadcast %6 : vector<1x64xf32> to vector<8x64xf32>
    %8 = arith.addf %5, %7 : vector<8x64xf32>
    %cst_6 = arith.constant 5.000000e-01 : f32
    %9 = vector.broadcast %cst_6 : f32 to vector<8x64xf32>
    %10 = arith.mulf %9, %8 : vector<8x64xf32>
    %cst_7 = arith.constant 0.797884583 : f32
    %11 = vector.broadcast %cst_7 : f32 to vector<8x64xf32>
    %12 = arith.mulf %11, %8 : vector<8x64xf32>
    %13 = arith.mulf %8, %8 : vector<8x64xf32>
    %cst_8 = arith.constant 4.471500e-02 : f32
    %14 = vector.broadcast %cst_8 : f32 to vector<8x64xf32>
    %15 = arith.mulf %14, %13 : vector<8x64xf32>
    %cst_9 = arith.constant 1.000000e+00 : f32
    %16 = vector.broadcast %cst_9 : f32 to vector<8x64xf32>
    %17 = arith.addf %16, %15 : vector<8x64xf32>
    %18 = arith.mulf %12, %17 : vector<8x64xf32>
    %19 = math.tanh %18 : vector<8x64xf32>
    %cst_10 = arith.constant 1.000000e+00 : f32
    %20 = vector.broadcast %cst_10 : f32 to vector<8x64xf32>
    %21 = arith.addf %20, %19 : vector<8x64xf32>
    %22 = arith.mulf %10, %21 : vector<8x64xf32>
    %c0_11 = arith.constant 0 : index
    %c0_12 = arith.constant 0 : index
    %23 = vector.load %arg11[%c0_11, %c0_12] : memref<8x32xf32, #tpu.memory_space<vmem>>, vector<8x32xf32>
    %24 = arith.truncf %22 : vector<8x64xf32> to vector<8x64xbf16>
    %c0_13 = arith.constant 0 : index
    %c0_14 = arith.constant 0 : index
    %25 = vector.load %arg7[%c0_13, %c0_14] : memref<64x32xbf16, #tpu.memory_space<vmem>>, vector<64x32xbf16>
    %cst_15 = arith.constant dense<0.000000e+00> : vector<8x32xf32>
    %26 = tpu.matmul %24, %25, %cst_15 {dimension_numbers = #tpu.dot_dimension_numbers<[1], [0], [0], [1], [0, 0, 1, 1], [], []>} : vector<8x64xbf16>, vector<64x32xbf16>, vector<8x32xf32> -> vector<8x32xf32>
    %27 = arith.addf %23, %26 : vector<8x32xf32>
    %c0_16 = arith.constant 0 : index
    %c0_17 = arith.constant 0 : index
    %28 = vector.load %arg11[%c0_16, %c0_17] : memref<8x32xf32, #tpu.memory_space<vmem>>, vector<8x32xf32>
    tpu.vector_store %arg11[%c0_16, %c0_17], %27 {strides = array<i32>} : memref<8x32xf32, #tpu.memory_space<vmem>>, vector<8x32xf32>,
    %c0_i32_18 = arith.constant 0 : i32
    %29 = arith.cmpi eq, %arg1, %c0_i32_18 : i32
    %30 = arith.extui %29 : i1 to i32
    %c0_i32_19 = arith.constant 0 : i32
    %31 = arith.cmpi ne, %30, %c0_i32_19 : i32
    scf.if %31 {
      %c0_20 = arith.constant 0 : index
      %c0_21 = arith.constant 0 : index
      %32 = vector.load %arg11[%c0_20, %c0_21] : memref<8x32xf32, #tpu.memory_space<vmem>>, vector<8x32xf32>
      %c0_22 = arith.constant 0 : index
      %c0_23 = arith.constant 0 : index
      %33 = vector.load %arg2[%c0_22, %c0_23] : memref<8x32xf32, #tpu.memory_space<vmem>>, vector<8x32xf32>
      %34 = arith.addf %32, %33 : vector<8x32xf32>
      %c0_24 = arith.constant 0 : index
      %c0_25 = arith.constant 0 : index
      %35 = vector.load %arg9[%c0_24, %c0_25] : memref<8x32xf32, #tpu.memory_space<vmem>>, vector<8x32xf32>
      tpu.vector_store %arg9[%c0_24, %c0_25], %34 {strides = array<i32>} : memref<8x32xf32, #tpu.memory_space<vmem>>, vector<8x32xf32>,
    } else {
    }
    return
  }
  func.func @transform_0(%arg0: i32, %arg1: i32) -> (i32, i32) {
    %c0_i32 = arith.constant 0 : i32
    %c0_i32_0 = arith.constant 0 : i32
    return %arg0, %c0_i32 : i32, i32
  }
  func.func @transform_1(%arg0: i32, %arg1: i32) -> (i32, i32) {
    %c0_i32 = arith.constant 0 : i32
    %c0_i32_0 = arith.constant 0 : i32
    %c0_i32_1 = arith.constant 0 : i32
    return %c0_i32, %c0_i32_0 : i32, i32
  }
  func.func @transform_2(%arg0: i32, %arg1: i32) -> (i32, i32) {
    %c0_i32 = arith.constant 0 : i32
    %c0_i32_0 = arith.constant 0 : i32
    %c0_i32_1 = arith.constant 0 : i32
    return %c0_i32, %c0_i32_0 : i32, i32
  }
  func.func @transform_3(%arg0: i32, %arg1: i32) -> (i32, i32) {
    %c0_i32 = arith.constant 0 : i32
    %c0_i32_0 = arith.constant 0 : i32
    return %c0_i32, %arg1 : i32, i32
  }
  func.func @transform_4(%arg0: i32, %arg1: i32) -> (i32, i32) {
    %c0_i32 = arith.constant 0 : i32
    %c0_i32_0 = arith.constant 0 : i32
    return %c0_i32, %arg1 : i32, i32
  }
  func.func @transform_5(%arg0: i32, %arg1: i32) -> (i32, i32) {
    %c0_i32 = arith.constant 0 : i32
    %c0_i32_0 = arith.constant 0 : i32
    return %arg1, %c0_i32 : i32, i32
  }
  func.func @transform_6(%arg0: i32, %arg1: i32) -> (i32, i32) {
    %c0_i32 = arith.constant 0 : i32
    %c0_i32_0 = arith.constant 0 : i32
    %c0_i32_1 = arith.constant 0 : i32
    return %c0_i32, %c0_i32_0 : i32, i32
  }
  func.func @transform_7(%arg0: i32, %arg1: i32) -> (i32, i32) {
    %c0_i32 = arith.constant 0 : i32
    %c0_i32_0 = arith.constant 0 : i32
    return %arg0, %c0_i32 : i32, i32
  }
}

</mosaic_0001>

<llo_original>
// kernel: _ffn_impl.1
$region0: #{_ffn_impl.1}
  #allocation0 [shape = 'u32[]', space=smem, size = 0x4, offset = 0x4, fixed_abs, tag = 'smem constant byte address 0x4 - core index']
  #allocation1 [shape = 'u32[144,128]{1,0:T(1,128)}', space=vmem, size = 0x12000, scoped, tag = 'internal scratch']
  #allocation2 [shape = 'bf16[8,32]{1,0:T(8,128)(2,1)}', space=vmem, size = 0x800, scoped, tag = 'scratch operand']
  #allocation3 [shape = 'f32[8,32]{1,0:T(8,128)}', space=vmem, size = 0x1000, scoped, tag = 'scratch operand']
  %s0 = inlined_call_operand.vmem [shape: f32[16,32], index: 0, kind: input, shape index: {}]
  %s1 = inlined_call_operand.vmem [shape: f32[1,32], index: 1, kind: input, shape index: {}]
  %s2 = inlined_call_operand.vmem [shape: f32[1,32], index: 2, kind: input, shape index: {}]
  %s3 = inlined_call_operand.vmem [shape: bf16[32,64], index: 3, kind: input, shape index: {}]
  %s4 = inlined_call_operand.vmem [shape: f32[1,64], index: 4, kind: input, shape index: {}]
  %s5 = inlined_call_operand.vmem [shape: bf16[64,32], index: 5, kind: input, shape index: {}]
  %s6 = inlined_call_operand.vmem [shape: f32[1,32], index: 6, kind: input, shape index: {}]
  %s7 = inlined_call_operand.hbm [shape: f32[16,32], index: 7, kind: output, shape index: {}]
  %s8 = sld [smem:[#allocation0]]
  $region69: #{_ffn_impl.1} parent=0
    _
  %s10 = ssub.s32 1, %s8
  %s11 = scalar_select 0, %s10, %s8
  $region1: #{_ffn_impl.1} parent=0
    #allocation4 [shape = 'u8[8192]{0}', space=vmem, size = 0x2000, scoped, tag = 'output window, operand 0']
    #allocation5 [shape = 's32[2]{0}', space=sflag, size = 0x8, scoped, tag = 'scoped memory for _ffn_impl.1']
    %12 = vsyncpa [#allocation5], 0
    %s13 = scalar_lea.sflag [#allocation5], 1
    %14 = vsyncpa %s13, 0
    loop: start=0, step=1, limit=4
    $region2: #{_ffn_impl.1} parent=1 // loop_pre_header
      _
    $region3: #{_ffn_impl.1} parent=1 // loop_header
      %s16 = sphi 0, %s20
      %p17 = scmp.ge.s32.totalorder %s16, 4
      %s23 = sphi 0, %s35
      %s24 = sphi 0, %s31
      %s25 = sphi 0, %s23
      %s26 = sphi 0, %s24
      %s27 = sphi 0, %s25
      %s28 = sphi 0, %s26
      %s38 = sphi 0, %s40
      %s41 = sphi 0, %s38
      %s42 = sphi 0, %s41
      %s58 = sphi 0, %s42
      %s62 = sphi 0, %s62
      %s64 = sphi 0, %s62
      %s65 = sphi 0, %s64
      %s79 = sphi 0, %s65
      %s83 = sphi 0, %s83
      %s85 = sphi 0, %s83
      %s86 = sphi 0, %s85
      %s100 = sphi 0, %s86
      %s106 = sphi 0, %s108
      %s109 = sphi 0, %s106
      %s110 = sphi 0, %s109
      %s126 = sphi 0, %s110
      %s132 = sphi 0, %s134
      %s135 = sphi 0, %s132
      %s136 = sphi 0, %s135
      %s152 = sphi 0, %s136
      %s158 = sphi 0, %s160
      %s161 = sphi 0, %s158
      %s162 = sphi 0, %s161
      %s178 = sphi 0, %s162
      %s182 = sphi 0, %s182
      %s184 = sphi 0, %s182
      %s185 = sphi 0, %s184
      %s199 = sphi 0, %s185
      %s205 = sphi 0, %s207
      %s208 = sphi 0, %s205
      %s209 = sphi 0, %s208
      %s225 = sphi 0, %s209
    $region4: #{_ffn_impl.1} parent=1 // loop_header_branch
      %19 = sbr.rel (%p17) target = $region8
    $region5: #{_ffn_impl.1} parent=1 // loop_body
      %s21 = ssub.s32 %s16, 1
      %s22 = ssub.s32 %s16, 2
      %s29 = sadd.s32 1, %s24
      %p30 = scmp.ge.s32.totalorder %s29, 1
      %s31 = scalar_select %p30, 0, %s29
      %s32 = sadd.s32 1, %s23
      %s33 = scalar_select %p30, %s32, %s23
      %p34 = scmp.ge.s32.totalorder %s33, 2
      %s35 = scalar_select %p34, 0, %s33
      %s36 = ssub.s32 %s23, %s35
      %p37 = scmp.eq.s32.totalorder %s36, 0
      %s39 = sadd.s32 %s38, 1
      %s40 = scalar_select %p37, %s38, %s39
      %p43 = pneg %p37
      %p44 = scmp.eq.s32.totalorder %s16, 1
      %p45 = por %p43, %p44
      %p46 = scmp.ne.s32.totalorder %s38, %s41
      %p47 = scmp.eq.s32.totalorder %s16, 0
      %p48 = por %p46, %p47
      %p49 = scmp.ne.s32.totalorder %s38, %s41
      %p50 = scmp.eq.s32.totalorder %s21, 1
      %p51 = por %p49, %p50
      %p52 = scmp.ne.s32.totalorder %s41, %s42
      %p53 = scmp.eq.s32.totalorder %s21, 0
      %p54 = por %p52, %p53
      %p55 = scmp.ne.s32.totalorder %s41, %s42
      %p56 = scmp.eq.s32.totalorder %s22, 1
      %p57 = por %p55, %p56
      %p59 = scmp.ne.s32.totalorder %s42, %s58
      %p60 = scmp.eq.s32.totalorder %s22, 0
      %p61 = por %p59, %p60
      %s63 = sadd.s32 %s62, 1
      %p66 = scmp.eq.s32.totalorder %s16, 1
      %p67 = scmp.ne.s32.totalorder %s62, %s64
      %p68 = scmp.eq.s32.totalorder %s16, 0
      %p69 = por %p67, %p68
      %p70 = scmp.ne.s32.totalorder %s62, %s64
      %p71 = scmp.eq.s32.totalorder %s21, 1
      %p72 = por %p70, %p71
      %p73 = scmp.ne.s32.totalorder %s64, %s65
      %p74 = scmp.eq.s32.totalorder %s21, 0
      %p75 = por %p73, %p74
      %p76 = scmp.ne.s32.totalorder %s64, %s65
      %p77 = scmp.eq.s32.totalorder %s22, 1
      %p78 = por %p76, %p77
      %p80 = scmp.ne.s32.totalorder %s65, %s79
      %p81 = scmp.eq.s32.totalorder %s22, 0
      %p82 = por %p80, %p81
      %s84 = sadd.s32 %s83, 1
      %p87 = scmp.eq.s32.totalorder %s16, 1
      %p88 = scmp.ne.s32.totalorder %s83, %s85
      %p89 = scmp.eq.s32.totalorder %s16, 0
      %p90 = por %p88, %p89
      %p91 = scmp.ne.s32.totalorder %s83, %s85
      %p92 = scmp.eq.s32.totalorder %s21, 1
      %p93 = por %p91, %p92
      %p94 = scmp.ne.s32.totalorder %s85, %s86
      %p95 = scmp.eq.s32.totalorder %s21, 0
      %p96 = por %p94, %p95
      %p97 = scmp.ne.s32.totalorder %s85, %s86
      %p98 = scmp.eq.s32.totalorder %s22, 1
      %p99 = por %p97, %p98
      %p101 = scmp.ne.s32.totalorder %s86, %s100
      %p102 = scmp.eq.s32.totalorder %s22, 0
      %p103 = por %p101, %p102
      %s104 = ssub.s32 %s24, %s31
      %p105 = scmp.eq.s32.totalorder %s104, 0
      %s107 = sadd.s32 %s106, 1
      %s108 = scalar_select %p105, %s106, %s107
      %p111 = pneg %p105
      %p112 = scmp.eq.s32.totalorder %s16, 1
      %p113 = por %p111, %p112
      %p114 = scmp.ne.s32.totalorder %s106, %s109
      %p115 = scmp.eq.s32.totalorder %s16, 0
      %p116 = por %p114, %p115
      %p117 = scmp.ne.s32.totalorder %s106, %s109
      %p118 = scmp.eq.s32.totalorder %s21, 1
      %p119 = por %p117, %p118
      %p120 = scmp.ne.s32.totalorder %s109, %s110
      %p121 = scmp.eq.s32.totalorder %s21, 0
      %p122 = por %p120, %p121
      %p123 = scmp.ne.s32.totalorder %s109, %s110
      %p124 = scmp.eq.s32.totalorder %s22, 1
      %p125 = por %p123, %p124
      %p127 = scmp.ne.s32.totalorder %s110, %s126
      %p128 = scmp.eq.s32.totalorder %s22, 0
      %p129 = por %p127, %p128
      %s130 = ssub.s32 %s24, %s31
      %p131 = scmp.eq.s32.totalorder %s130, 0
      %s133 = sadd.s32 %s132, 1
      %s134 = scalar_select %p131, %s132, %s133
      %p137 = pneg %p131
      %p138 = scmp.eq.s32.totalorder %s16, 1
      %p139 = por %p137, %p138
      %p140 = scmp.ne.s32.totalorder %s132, %s135
      %p141 = scmp.eq.s32.totalorder %s16, 0
      %p142 = por %p140, %p141
      %p143 = scmp.ne.s32.totalorder %s132, %s135
      %p144 = scmp.eq.s32.totalorder %s21, 1
      %p145 = por %p143, %p144
      %p146 = scmp.ne.s32.totalorder %s135, %s136
      %p147 = scmp.eq.s32.totalorder %s21, 0
      %p148 = por %p146, %p147
      %p149 = scmp.ne.s32.totalorder %s135, %s136
      %p150 = scmp.eq.s32.totalorder %s22, 1
      %p151 = por %p149, %p150
      %p153 = scmp.ne.s32.totalorder %s136, %s152
      %p154 = scmp.eq.s32.totalorder %s22, 0
      %p155 = por %p153, %p154
      %s156 = ssub.s32 %s24, %s31
      %p157 = scmp.eq.s32.totalorder %s156, 0
      %s159 = sadd.s32 %s158, 1
      %s160 = scalar_select %p157, %s158, %s159
      %p163 = pneg %p157
      %p164 = scmp.eq.s32.totalorder %s16, 1
      %p165 = por %p163, %p164
      %p166 = scmp.ne.s32.totalorder %s158, %s161
      %p167 = scmp.eq.s32.totalorder %s16, 0
      %p168 = por %p166, %p167
      %p169 = scmp.ne.s32.totalorder %s158, %s161
      %p170 = scmp.eq.s32.totalorder %s21, 1
      %p171 = por %p169, %p170
      %p172 = scmp.ne.s32.totalorder %s161, %s162
      %p173 = scmp.eq.s32.totalorder %s21, 0
      %p174 = por %p172, %p173
      %p175 = scmp.ne.s32.totalorder %s161, %s162
      %p176 = scmp.eq.s32.totalorder %s22, 1
      %p177 = por %p175, %p176
      %p179 = scmp.ne.s32.totalorder %s162, %s178
      %p180 = scmp.eq.s32.totalorder %s22, 0
      %p181 = por %p179, %p180
      %s183 = sadd.s32 %s182, 1
      %p186 = scmp.eq.s32.totalorder %s16, 1
      %p187 = scmp.ne.s32.totalorder %s182, %s184
      %p188 = scmp.eq.s32.totalorder %s16, 0
      %p189 = por %p187, %p188
      %p190 = scmp.ne.s32.totalorder %s182, %s184
      %p191 = scmp.eq.s32.totalorder %s21, 1
      %p192 = por %p190, %p191
      %p193 = scmp.ne.s32.totalorder %s184, %s185
      %p194 = scmp.eq.s32.totalorder %s21, 0
      %p195 = por %p193, %p194
      %p196 = scmp.ne.s32.totalorder %s184, %s185
      %p197 = scmp.eq.s32.totalorder %s22, 1
      %p198 = por %p196, %p197
      %p200 = scmp.ne.s32.totalorder %s185, %s199
      %p201 = scmp.eq.s32.totalorder %s22, 0
      %p202 = por %p200, %p201
      %s203 = ssub.s32 %s23, %s35
      %p204 = scmp.eq.s32.totalorder %s203, 0
      %s206 = sadd.s32 %s205, 1
      %s207 = scalar_select %p204, %s205, %s206
      %p210 = pneg %p204
      %p211 = scmp.eq.s32.totalorder %s16, 1
      %p212 = por %p210, %p211
      %p213 = scmp.ne.s32.totalorder %s205, %s208
      %p214 = scmp.eq.s32.totalorder %s16, 0
      %p215 = por %p213, %p214
      %p216 = scmp.ne.s32.totalorder %s205, %s208
      %p217 = scmp.eq.s32.totalorder %s21, 1
      %p218 = por %p216, %p217
      %p219 = scmp.ne.s32.totalorder %s208, %s209
      %p220 = scmp.eq.s32.totalorder %s21, 0
      %p221 = por %p219, %p220
      %p222 = scmp.ne.s32.totalorder %s208, %s209
      %p223 = scmp.eq.s32.totalorder %s22, 1
      %p224 = por %p222, %p223
      %p226 = scmp.ne.s32.totalorder %s209, %s225
      %p227 = scmp.eq.s32.totalorder %s22, 0
      %p228 = por %p226, %p227
      %p229 = scmp.le.s32.totalorder 1, %s16
      %p230 = scmp.lt.s32.totalorder %s16, 3
      %p231 = pnand %p229, %p230
      %p232 = pneg %p231
      // Predicated region
      $region9: #{_ffn_impl.1} parent=5 // pred_check
        _
      $region10: #{_ffn_impl.1} parent=5 // pred_check_branch
        %234 = sbr.rel (%p231) target = $region12
      $region11: #{_ffn_impl.1} parent=5 // pred_region
        %s235 = ssub.s32 %s16, 1
        // Predicated region
        $region13: #{_ffn_impl.1} parent=11 // pred_check
          %p236 = pneg %p75
        $region14: #{_ffn_impl.1} parent=11 // pred_check_branch
          %238 = sbr.rel (%p236) target = $region16
        $region15: #{_ffn_impl.1} parent=11 // pred_region
          _
        $region16: #{_ffn_impl.1} parent=11 // pred_fallthru
          _
        // Predicated region
        $region17: #{_ffn_impl.1} parent=11 // pred_check
          %p239 = pneg %p96
        $region18: #{_ffn_impl.1} parent=11 // pred_check_branch
          %241 = sbr.rel (%p239) target = $region20
        $region19: #{_ffn_impl.1} parent=11 // pred_region
          _
        $region20: #{_ffn_impl.1} parent=11 // pred_fallthru
          _
        // Predicated region
        $region21: #{_ffn_impl.1} parent=11 // pred_check
          %p242 = pneg %p122
        $region22: #{_ffn_impl.1} parent=11 // pred_check_branch
          %244 = sbr.rel (%p242) target = $region24
        $region23: #{_ffn_impl.1} parent=11 // pred_region
          %p245 = scmp.lt.s32.totalorder %s26, 0
          %s246 = scalar_select %p245, %s26, 0
          %s247 = smul.addr %s246, 4
          %s248 = scalar_lea.vmem %s3, %s247
        $region24: #{_ffn_impl.1} parent=11 // pred_fallthru
          _
        // Predicated region
        $region25: #{_ffn_impl.1} parent=11 // pred_check
          %p249 = pneg %p148
        $region26: #{_ffn_impl.1} parent=11 // pred_check_branch
          %251 = sbr.rel (%p249) target = $region28
        $region27: #{_ffn_impl.1} parent=11 // pred_region
          %p252 = scmp.lt.s32.totalorder %s26, 0
          %s253 = scalar_select %p252, %s26, 0
          %s254 = scalar_lea.vmem %s4, %s253
        $region28: #{_ffn_impl.1} parent=11 // pred_fallthru
          _
        // Predicated region
        $region29: #{_ffn_impl.1} parent=11 // pred_check
          %p255 = pneg %p174
        $region30: #{_ffn_impl.1} parent=11 // pred_check_branch
          %257 = sbr.rel (%p255) target = $region32
        $region31: #{_ffn_impl.1} parent=11 // pred_region
          %s258 = smul.u32 8, %s26
          %p259 = scmp.lt.s32.totalorder %s258, 7
          %s260 = scalar_select %p259, %s258, 7
          %s261 = smul.addr %s260, 4
          %s262 = scalar_lea.vmem %s5, %s261
          %s263 = smul.u32 8, %s26
        $region32: #{_ffn_impl.1} parent=11 // pred_fallthru
          _
        // Predicated region
        $region33: #{_ffn_impl.1} parent=11 // pred_check
          %p264 = pneg %p195
        $region34: #{_ffn_impl.1} parent=11 // pred_check_branch
          %266 = sbr.rel (%p264) target = $region36
        $region35: #{_ffn_impl.1} parent=11 // pred_region
          _
        $region36: #{_ffn_impl.1} parent=11 // pred_fallthru
          _
      $region12: #{_ffn_impl.1} parent=5 // pred_fallthru
        _
      %p267 = scmp.lt.s32.totalorder %s16, 2
      // Predicated region
      $region37: #{_ffn_impl.1} parent=5 // pred_check
        %p268 = pneg %p267
      $region38: #{_ffn_impl.1} parent=5 // pred_check_branch
        %270 = sbr.rel (%p268) target = $region40
      $region39: #{_ffn_impl.1} parent=5 // pred_region
        // Predicated region
        $region41: #{_ffn_impl.1} parent=39 // pred_check
          %p271 = pneg %p48
        $region42: #{_ffn_impl.1} parent=39 // pred_check_branch
          %273 = sbr.rel (%p271) target = $region44
        $region43: #{_ffn_impl.1} parent=39 // pred_region
          %p274 = scmp.lt.s32.totalorder %s23, 1
          %s275 = scalar_select %p274, %s23, 1
          %s276 = smul.addr %s275, 8
          %s277 = scalar_lea.vmem %s0, %s276
        $region44: #{_ffn_impl.1} parent=39 // pred_fallthru
          _
      $region40: #{_ffn_impl.1} parent=5 // pred_fallthru
        _
      %p278 = scmp.le.s32.totalorder 1, %s16
      %p279 = scmp.lt.s32.totalorder %s16, 3
      %p280 = pnand %p278, %p279
      %p281 = pneg %p280
      // Predicated region
      $region45: #{_ffn_impl.1} parent=5 // pred_check
        _
      $region46: #{_ffn_impl.1} parent=5 // pred_check_branch
        %283 = sbr.rel (%p280) target = $region48
      $region47: #{_ffn_impl.1} parent=5 // pred_region
        %s284 = ssub.s32 %s16, 1
        %p285 = scmp.lt.s32.totalorder %s25, 1
        %s286 = scalar_select %p285, %s25, 1
        %s287 = smul.addr %s286, 8
        %s288 = scalar_lea.vmem %s0, %s287
        %p289 = pneg %p54
        %p290 = pneg %p51
        %p291 = pneg %p75
        %p292 = pneg %p72
        %p293 = pneg %p96
        %p294 = pneg %p93
        %p295 = scmp.lt.s32.totalorder %s26, 0
        %s296 = scalar_select %p295, %s26, 0
        %s297 = smul.addr %s296, 4
        %s298 = scalar_lea.vmem %s3, %s297
        %p299 = pneg %p122
        %p300 = pneg %p119
        %p301 = scmp.lt.s32.totalorder %s26, 0
        %s302 = scalar_select %p301, %s26, 0
        %s303 = scalar_lea.vmem %s4, %s302
        %p304 = pneg %p148
        %p305 = pneg %p145
        %s306 = smul.u32 8, %s26
        %p307 = scmp.lt.s32.totalorder %s306, 7
        %s308 = scalar_select %p307, %s306, 7
        %s309 = smul.addr %s308, 4
        %s310 = scalar_lea.vmem %s5, %s309
        %p311 = pneg %p174
        %p312 = pneg %p171
        %p313 = pneg %p195
        %p314 = pneg %p192
        %p315 = pneg %p221
        %p316 = pneg %p218
        %s317 = sand.u32 %s208, 1
        %s318 = scalar_lea.sflag [#allocation5], %s317
        %s319 = sand.u32 %s208, 1
        %s320 = smul.addr %s319, 8
        %s321 = scalar_lea.vmem [#allocation4], %s320
        %p322 = scmp.lt.s32.totalorder %s25, 1
        %s323 = scalar_select %p322, %s25, 1
        %s324 = smul.addr %s323, 8
        %s325 = scalar_lea.vmem %s0, %s324
        %p326 = scmp.lt.s32.totalorder %s26, 0
        %s327 = scalar_select %p326, %s26, 0
        %s328 = smul.addr %s327, 4
        %s329 = scalar_lea.vmem %s3, %s328
        %p330 = scmp.lt.s32.totalorder %s26, 0
        %s331 = scalar_select %p330, %s26, 0
        %s332 = scalar_lea.vmem %s4, %s331
        %s333 = smul.u32 8, %s26
        %p334 = scmp.lt.s32.totalorder %s333, 7
        %s335 = scalar_select %p334, %s333, 7
        %s336 = smul.addr %s335, 4
        %s337 = scalar_lea.vmem %s5, %s336
        %s338 = smul.u32 8, %s26
        %p340 = scmp.eq.s32.totalorder %s26, 0
        // Predicated region
        $region49: #{_ffn_impl.1} parent=47 // pred_check
          %p341 = pneg %p340
        $region50: #{_ffn_impl.1} parent=47 // pred_check_branch
          %343 = sbr.rel (%p341) target = $region52
        $region51: #{_ffn_impl.1} parent=47 // pred_region
          %v344 = vld [vmem:[%s325] sm:$0xff]
          %vm345 = vcmask 261120
          %v346 = vsel %vm345, %v344, 0.0
          %347 = vadd.xlane.f32.xlu0 %v346
          %v348 = vpop.xlane.xlu0 %347
          %v349 = vrcp.pop 32.0
          %v350 = vmul.f32 %v348, %v349
          %v351 = vsub.f32 %v344, %v350
          %v352 = vmul.f32 %v351, %v351
          %v353 = vsel %vm345, %v352, 0.0
          %354 = vadd.xlane.f32.xlu0 %v353
          %v355 = vpop.xlane.xlu0 %354
          %v356 = vmul.f32 %v355, %v349
          %v357 = vadd.f32 %v356, 1e-06
          %v358 = vrsqrt.pop %v357
          %v359 = vmul.f32 %v351, %v358
          %v360 = vld [vmem:[%s1] sm:$0x1]
          %v362 = vlaneseq
          %v363 = vshrl.u32 %v362, 7
          %v364 = vsub.s32 0, %v363
          %v365 = vrot.slane %v360, %v364
          %v367 = vmul.f32 %v359, %v365
          %v368 = vld [vmem:[%s2] sm:$0x1]
          %v370 = vlaneseq
          %v371 = vshrl.u32 %v370, 7
          %v372 = vsub.s32 0, %v371
          %v373 = vrot.slane %v368, %v372
          %v375 = vadd.f32 %v367, %v373
          %v376 = vpack.c.bf16 %v375, %v375
          %vm377 = vcmask 257024
          %378 = vst.msk [vmem:[#allocation2] sm:$0xf] %vm377, %v376
          %v379 = vld [vmem:[%s6] sm:$0x1]
          %v381 = vlaneseq
          %v382 = vshrl.u32 %v381, 7
          %v383 = vsub.s32 0, %v382
          %v384 = vrot.slane %v379, %v383
          %386 = vst.msk [vmem:[#allocation3] sm:$0xff] %vm345, %v384
        $region52: #{_ffn_impl.1} parent=47 // pred_fallthru
          _
        %v387 = vld [vmem:[#allocation2] sm:$0xf]
        %v388 = vld [vmem:[%s329] sm:$0xf]
        %v389 = vld [vmem:[%s329 + $0x4] sm:$0xf]
        %v390 = vld [vmem:[%s329 + $0x8] sm:$0xf]
        %v391 = vld [vmem:[%s329 + $0xc] sm:$0xf]
        %v392 = vld [vmem:[%s332] sm:$0x1]
        %v394 = vlaneseq
        %v395 = vshrl.u32 %v394, 7
        %v396 = vsub.s32 0, %v395
        %v397 = vrot.slane %v392, %v396
        %v403 = vunpack.c.l.b16 %v388
        %v404 = vunpack.c.l.b16 %v389
        %v405 = vunpack.c.l.b16 %v390
        %v406 = vunpack.c.l.b16 %v391
        %v407 = vpack.c.b16 %v404, %v403
        %v408 = vpack.c.b16 %v406, %v405
        %vm411 = vcmask 261120
        %v413 = vsel %vm411, %v387, 0
        %415 = vmatprep.subr.bf16.mxu0 0
        %416 = vmatpush1.bf16.msra.mxu0 %v407
        %417 = vmatprep.subr.bf16.mxu0 0
        %418 = vmatpush1.bf16.msra.mxu0 %v408
        %419 = vmatprep.subr.bf16.mxu0 0
        %420 = vmatpush1.bf16.msra.mxu0 0
        %421 = vmatprep.subr.bf16.mxu0 0
        %422 = vmatpush1.bf16.msra.mxu0 0
        %423 = vmatprep.subr.bf16.mxu0 0
        %424 = vmatpush1.bf16.msra.mxu0 0
        %425 = vmatprep.subr.bf16.mxu0 0
        %426 = vmatpush1.bf16.msra.mxu0 0
        %427 = vmatprep.subr.bf16.mxu0 0
        %428 = vmatpush1.bf16.msra.mxu0 0
        %429 = vmatprep.subr.bf16.mxu0 0
        %430 = vmatpush1.bf16.msra.mxu0 0
        %431 = vmatprep.subr.bf16.mxu0 0
        %432 = vmatpush1.bf16.msra.mxu0 0
        %433 = vmatprep.subr.bf16.mxu0 0
        %434 = vmatpush1.bf16.msra.mxu0 0
        %435 = vmatprep.subr.bf16.mxu0 0
        %436 = vmatpush1.bf16.msra.mxu0 0
        %437 = vmatprep.subr.bf16.mxu0 0
        %438 = vmatpush1.bf16.msra.mxu0 0
        %439 = vmatprep.subr.bf16.mxu0 0
        %440 = vmatpush1.bf16.msra.mxu0 0
        %441 = vmatprep.subr.bf16.mxu0 0
        %442 = vmatpush1.bf16.msra.mxu0 0
        %443 = vmatprep.subr.bf16.mxu0 0
        %444 = vmatpush1.bf16.msra.mxu0 0
        %445 = vmatprep.subr.bf16.mxu0 0
        %446 = vmatpush1.bf16.msra.mxu0 0
        %447 = vmatprep.mubr.bf16.mxu0 0
        %448 = vmatmul.mubr.bf16.gmra.mrb[0].mxu0 %v413
        %v449 = vpop.f32.mrb[0].mxu0
        %v450 = vadd.f32 %v397, %v449
        %v451 = vpop.f32.mrb[0].mxu0
        %v452 = vpop.f32.mrb[0].mxu0
        %v453 = vpop.f32.mrb[0].mxu0
        %454 = vdwg.mxu0
        %v455 = vmul.f32 %v450, 0.5
        %v456 = vmul.f32 %v450, 0.7978846
        %v457 = vmul.f32 %v450, %v450
        %v458 = vmul.f32 %v457, 0.044715
        %v459 = vadd.f32 %v458, 1.0
        %v460 = vmul.f32 %v456, %v459
        %v461 = vtanh.pop %v460
        %v462 = vadd.f32 %v461, 1.0
        %v463 = vmul.f32 %v455, %v462
        %v464 = vld [vmem:[#allocation3] sm:$0xff]
        %v465 = vpack.c.bf16 %v463, %v463
        %v466 = vld [vmem:[%s337] sm:$0xf]
        %v467 = vld [vmem:[%s337 + $0x4] sm:$0xf]
        %v468 = vld [vmem:[%s337 + $0x8] sm:$0xf]
        %v469 = vld [vmem:[%s337 + $0xc] sm:$0xf]
        %v470 = vld [vmem:[%s337 + $0x10] sm:$0xf]
        %v471 = vld [vmem:[%s337 + $0x14] sm:$0xf]
        %v472 = vld [vmem:[%s337 + $0x18] sm:$0xf]
        %v473 = vld [vmem:[%s337 + $0x1c] sm:$0xf]
        %v482 = vunpack.c.l.b16 %v466
        %v483 = vunpack.c.l.b16 %v467
        %v484 = vunpack.c.l.b16 %v468
        %v485 = vunpack.c.l.b16 %v469
        %v486 = vunpack.c.l.b16 %v470
        %v487 = vunpack.c.l.b16 %v471
        %v488 = vunpack.c.l.b16 %v472
        %v489 = vunpack.c.l.b16 %v473
        %v490 = vpack.c.b16 %v483, %v482
        %v491 = vpack.c.b16 %v485, %v484
        %v492 = vpack.c.b16 %v487, %v486
        %v493 = vpack.c.b16 %v489, %v488
        %vm498 = vcmask 523264
        %v500 = vsel %vm498, %v465, 0
        %502 = vmatprep.subr.bf16.mxu0 0
        %503 = vmatpush1.bf16.msra.mxu0 %v490
        %504 = vmatprep.subr.bf16.mxu0 0
        %505 = vmatpush1.bf16.msra.mxu0 %v491
        %506 = vmatprep.subr.bf16.mxu0 0
        %507 = vmatpush1.bf16.msra.mxu0 %v492
        %508 = vmatprep.subr.bf16.mxu0 0
        %509 = vmatpush1.bf16.msra.mxu0 %v493
        %510 = vmatprep.subr.bf16.mxu0 0
        %511 = vmatpush1.bf16.msra.mxu0 0
        %512 = vmatprep.subr.bf16.mxu0 0
        %513 = vmatpush1.bf16.msra.mxu0 0
        %514 = vmatprep.subr.bf16.mxu0 0
        %515 = vmatpush1.bf16.msra.mxu0 0
        %516 = vmatprep.subr.bf16.mxu0 0
        %517 = vmatpush1.bf16.msra.mxu0 0
        %518 = vmatprep.subr.bf16.mxu0 0
        %519 = vmatpush1.bf16.msra.mxu0 0
        %520 = vmatprep.subr.bf16.mxu0 0
        %521 = vmatpush1.bf16.msra.mxu0 0
        %522 = vmatprep.subr.bf16.mxu0 0
        %523 = vmatpush1.bf16.msra.mxu0 0
        %524 = vmatprep.subr.bf16.mxu0 0
        %525 = vmatpush1.bf16.msra.mxu0 0
        %526 = vmatprep.subr.bf16.mxu0 0
        %527 = vmatpush1.bf16.msra.mxu0 0
        %528 = vmatprep.subr.bf16.mxu0 0
        %529 = vmatpush1.bf16.msra.mxu0 0
        %530 = vmatprep.subr.bf16.mxu0 0
        %531 = vmatpush1.bf16.msra.mxu0 0
        %532 = vmatprep.subr.bf16.mxu0 0
        %533 = vmatpush1.bf16.msra.mxu0 0
        %534 = vmatprep.mubr.bf16.mxu0 0
        %535 = vmatmul.mubr.bf16.gmra.mrb[0].mxu0 %v500
        %v536 = vpop.f32.mrb[0].mxu0
        %v537 = vadd.f32 0.0, %v536
        %v538 = vpop.f32.mrb[0].mxu0
        %v539 = vpop.f32.mrb[0].mxu0
        %v540 = vpop.f32.mrb[0].mxu0
        %541 = vdwg.mxu0
        %v542 = vadd.f32 %v464, %v537
        %543 = vst.msk [vmem:[#allocation3] sm:$0xff] %vm411, %v542
        // Predicated region
        $region53: #{_ffn_impl.1} parent=47 // pred_check
          %p544 = pneg %p340
        $region54: #{_ffn_impl.1} parent=47 // pred_check_branch
          %546 = sbr.rel (%p544) target = $region56
        $region55: #{_ffn_impl.1} parent=47 // pred_region
          %v547 = vld [vmem:[#allocation3] sm:$0xff]
          %v548 = vld [vmem:[%s325] sm:$0xff]
          %v549 = vadd.f32 %v547, %v548
          %550 = vst.msk [vmem:[%s321] sm:$0xff] %vm411, %v549
        $region56: #{_ffn_impl.1} parent=47 // pred_fallthru
          _
        %s551 = sand.u32 %s208, 1
        %s552 = scalar_lea.sflag [#allocation5], %s551
        %s553 = sand.u32 %s208, 1
        %s554 = smul.addr %s553, 8
        %s555 = scalar_lea.vmem [#allocation4], %s554
        // Predicated region
        $region57: #{_ffn_impl.1} parent=47 // pred_check
          %p556 = pneg %p218
        $region58: #{_ffn_impl.1} parent=47 // pred_check_branch
          %558 = sbr.rel (%p556) target = $region60
        $region59: #{_ffn_impl.1} parent=47 // pred_region
          %s560 = ssub.s32 128, 128
          %561 = vsyncadd %s552, %s560
          %s562 = smul.addr %s25, 128
          %s563 = scalar_lea.hbm %s7, %s562
          %s565 = sshll.u32 %s555, 4
          %s566 = int_to_ptr.vmem [resolvable:$true] %s565
          %568 = dma.vmem_to_hbm [thread:$0]  %s566, 128, %s563, %s552
        $region60: #{_ffn_impl.1} parent=47 // pred_fallthru
          _
      $region48: #{_ffn_impl.1} parent=5 // pred_fallthru
        _
      %p569 = scmp.le.s32.totalorder 2, %s16
      // Predicated region
      $region61: #{_ffn_impl.1} parent=5 // pred_check
        %p570 = pneg %p569
      $region62: #{_ffn_impl.1} parent=5 // pred_check_branch
        %572 = sbr.rel (%p570) target = $region64
      $region63: #{_ffn_impl.1} parent=5 // pred_region
        %s573 = ssub.s32 %s16, 2
        // Predicated region
        $region65: #{_ffn_impl.1} parent=63 // pred_check
          %p574 = pneg %p224
        $region66: #{_ffn_impl.1} parent=63 // pred_check_branch
          %576 = sbr.rel (%p574) target = $region68
        $region67: #{_ffn_impl.1} parent=63 // pred_region
          %s577 = sand.u32 %s209, 1
          %s578 = scalar_lea.sflag [#allocation5], %s577
          %s579 = sand.u32 %s209, 1
          %s580 = smul.addr %s579, 8
          %s581 = scalar_lea.vmem [#allocation4], %s580
          %582 = dma.done %s578, 128
        $region68: #{_ffn_impl.1} parent=63 // pred_fallthru
          _
      $region64: #{_ffn_impl.1} parent=5 // pred_fallthru
        _
    $region6: #{_ffn_impl.1} parent=1 // loop_footer
      %s20 = sadd.s32 1, %s16
    $region7: #{_ffn_impl.1} parent=1 // loop_footer_branch
      %15 = sbr.rel target = $region3
    $region8: #{_ffn_impl.1} parent=1 // loop_exit
      _
    %583 = vsyncpa [#allocation5], 1
    %s584 = scalar_lea.sflag [#allocation5], 1
    %585 = vsyncpa %s584, 1

</llo_original>
